<compile_context>
chip_gen: v7x
topology: tpu7x:2x2x1
jax: 0.10.0
libtpu: 0.0.40
codegen_flags: <defaults>
</compile_context>

<pallas_src>
import functools

import jax
import jax.numpy as jnp
from jax import lax
from jax.experimental import pallas as pl
from jax.experimental.pallas import tpu as pltpu


# ----------------------------- chip defaults --------------------------------

def _chip_defaults():
    """(max row tile, vmem_limit_bytes, min total grid steps) per chip class."""
    vmem_cap = 64 << 20
    try:
        vmem_cap = int(pltpu.get_tpu_info().vmem_capacity_bytes)
    except Exception:
        pass
    if vmem_cap >= (100 << 20):
        # v5e / v6e: 128 MiB VMEM, single TensorCore, HBM-write-bound ->
        # large tiles amortize the ~0.35us per-grid-step overhead.
        return 8192, 96 << 20, 2
    # v7x-class: 64 MiB VMEM, 2 TensorCores -> smaller tiles, keep the grid
    # with >=4 steps so both cores get work.
    return 2048, 40 << 20, 4


_TM_MAX_DEFAULT, _VMEM_LIMIT_DEFAULT, _MIN_STEPS_DEFAULT = _chip_defaults()


# ----------------------------- Pallas kernel --------------------------------

_VPU_K_MAX = 8  # contract on the VPU (broadcast-FMA) only for very small K


def _conv1x1_from_ref(w_ref, b_ref, act_ref):
    """1x1 conv: (C_out, K) @ (K, T) + bias, activations read from a VMEM ref.

    Tiny K  -> VPU broadcast-FMA outer product (MXU would be >95% idle);
               rows are re-read from the ref per k-step so the whole activation
               tile never has to stay live in vregs.
    Large K -> MXU matmul (vector-extended slot is otherwise idle) at HIGHEST
               precision so f32 accuracy matches the VPU/f32 reference.
    """
    w = w_ref[...].astype(jnp.float32)
    b = b_ref[...].astype(jnp.float32)
    k = w.shape[1]
    if k <= _VPU_K_MAX:
        acc = b + w[:, 0:1] * act_ref[0:1, :].astype(jnp.float32)
        for kk in range(1, k):                       # static unroll (K = 4)
            acc = acc + w[:, kk:kk + 1] * act_ref[kk:kk + 1, :].astype(jnp.float32)
        return acc
    return jnp.dot(w, act_ref[...].astype(jnp.float32),
                   preferred_element_type=jnp.float32,
                   precision=lax.Precision.HIGHEST) + b


def _graph_path_kernel(x_ref, w1_ref, b1_ref, w2_ref, b2_ref, y_ref, o_ref):
    # x_ref : (C_IN,  TM)   pixels on the lane axis (lane-dense)
    # w1_ref: (C_MID, C_IN)  b1_ref: (C_MID, 1)
    # w2_ref: (C_OUT, C_MID) b2_ref: (C_OUT, 1)
    # y_ref : (C_MID, TM)    o_ref : (C_OUT, TM)

    # sub[:index]  == conv1 (1x1) + bias + ReLU6
    y = jnp.clip(_conv1x1_from_ref(w1_ref, b1_ref, x_ref), 0.0, 6.0)
    y_ref[...] = y.astype(y_ref.dtype)

    # sub[index:]  == conv2 (1x1) + bias + ReLU6.  y is consumed straight from
    # its VMEM output buffer (no HBM round trip, no duplicate live copy).
    o = jnp.clip(_conv1x1_from_ref(w2_ref, b2_ref, y_ref), 0.0, 6.0)
    o_ref[...] = o.astype(o_ref.dtype)


# --------------------------- GraphPath wrapper -------------------------------

def _round_down_128(v: int) -> int:
    return max(128, (v // 128) * 128)


def _choose_tile(n: int, hw: int, tm_max: int, min_steps: int) -> int:
    """Largest lane-aligned tile <= tm_max, shrunk (never below 128) until the
    grid has at least `min_steps` total steps (keeps both v7x TCs busy)."""
    hw128 = pl.cdiv(hw, 128) * 128
    tm = _round_down_128(min(tm_max, hw128))
    while tm > 128 and n * pl.cdiv(hw, tm) < min_steps:
        tm = _round_down_128(tm // 2)
    return tm


@functools.partial(jax.jit, static_argnames=("index", "tm_max"))
def graph_path_forward(x_nchw: jax.Array, params: dict, index: int = 2,
                       tm_max: int | None = None):
    """Mirrors GraphPath.forward: returns (x, y), y = activation at the split.

    params["w1"]: (C_MID, C_IN)  params["b1"]: (C_MID,)
    params["w2"]: (C_OUT, C_MID) params["b2"]: (C_OUT,)
    (same layout as squeezed PyTorch Conv2d 1x1 weights).
    """
    assert index == 2, "synthetic instantiation splits after the first conv+ReLU6"
    if tm_max is None:
        tm_max = _TM_MAX_DEFAULT

    n, c_in, h, w = x_nchw.shape
    hw = h * w
    c_mid = params["w1"].shape[0]
    c_out = params["w2"].shape[0]
    dtype = x_nchw.dtype

    # Free reshape: NCHW -> (N, C, H*W); pixels land on the lane axis.
    x_rows = x_nchw.reshape(n, c_in, hw)

    # Tiny SSD heads (5x5 / 3x3 / 1x1): fold batch onto the lane axis so we do
    # not pad a handful of pixels up to a 128-lane tile per image.
    fold_batch = (hw < 128) and (n > 1)
    if fold_batch:
        x_rows = jnp.transpose(x_rows, (1, 0, 2)).reshape(1, c_in, n * hw)
        n_eff, hw_eff = 1, n * hw
    else:
        n_eff, hw_eff = n, hw

    tm_eff = _choose_tile(n_eff, hw_eff, tm_max, _MIN_STEPS_DEFAULT)
    hw_p = pl.cdiv(hw_eff, tm_eff) * tm_eff
    if hw_p != hw_eff:
        x_rows = jnp.pad(x_rows, ((0, 0), (0, 0), (0, hw_p - hw_eff)))

    b1 = params["b1"].reshape(c_mid, 1)
    b2 = params["b2"].reshape(c_out, 1)

    grid = (n_eff, hw_p // tm_eff)

    y_p, o_p = pl.pallas_call(
        _graph_path_kernel,
        out_shape=(
            jax.ShapeDtypeStruct((n_eff, c_mid, hw_p), dtype),
            jax.ShapeDtypeStruct((n_eff, c_out, hw_p), dtype),
        ),
        grid_spec=pltpu.PrefetchScalarGridSpec(
            num_scalar_prefetch=0,
            grid=grid,
            in_specs=[
                pl.BlockSpec((None, c_in, tm_eff), lambda b, i: (b, 0, i)),
                pl.BlockSpec((c_mid, c_in), lambda b, i: (0, 0)),   # resident
                pl.BlockSpec((c_mid, 1), lambda b, i: (0, 0)),      # resident
                pl.BlockSpec((c_out, c_mid), lambda b, i: (0, 0)),  # resident
                pl.BlockSpec((c_out, 1), lambda b, i: (0, 0)),      # resident
            ],
            out_specs=[
                pl.BlockSpec((None, c_mid, tm_eff), lambda b, i: (b, 0, i)),
                pl.BlockSpec((None, c_out, tm_eff), lambda b, i: (b, 0, i)),
            ],
        ),
        compiler_params=pltpu.CompilerParams(
            dimension_semantics=("parallel", "parallel"),
            vmem_limit_bytes=int(_VMEM_LIMIT_DEFAULT),
        ),
    )(x_rows, params["w1"], b1, params["w2"], b2)

    if hw_p != hw_eff:
        y_p = y_p[..., :hw_eff]
        o_p = o_p[..., :hw_eff]

    if fold_batch:
        y_p = jnp.transpose(y_p.reshape(c_mid, n, hw), (1, 0, 2))
        o_p = jnp.transpose(o_p.reshape(c_out, n, hw), (1, 0, 2))

    # Free reshapes back to NCHW.
    x_out = o_p.reshape(n, c_out, h, w)
    y_out = y_p.reshape(n, c_mid, h, w)
    return x_out, y_out


# --------------------------------- main --------------------------------------

if __name__ == "__main__":
    N, C_IN, H, W = 2, 4, 16, 16
    C_MID, C_OUT = 32, 8

    key = jax.random.PRNGKey(0)
    k_x, k_w1, k_b1, k_w2, k_b2, k_x2 = jax.random.split(key, 6)

    params = {
        # PyTorch Conv2d 1x1 weight layout (C_out, C_in) after squeezing.
        "w1": jax.random.normal(k_w1, (C_MID, C_IN), jnp.float32) * 0.1,
        "b1": jax.random.normal(k_b1, (C_MID,), jnp.float32) * 0.1,
        "w2": jax.random.normal(k_w2, (C_OUT, C_MID), jnp.float32) * 0.1,
        "b2": jax.random.normal(k_b2, (C_OUT,), jnp.float32) * 0.1,
    }

    # Pure-JAX reference (HIGHEST precision so it matches the kernel's f32 math).
    def ref(x_nchw, p):
        hp = lax.Precision.HIGHEST
        xr = jnp.transpose(x_nchw, (0, 2, 3, 1))              # NHWC
        y = jnp.clip(jnp.einsum("nhwc,mc->nhwm", xr, p["w1"], precision=hp)
                     + p["b1"], 0.0, 6.0)
        o = jnp.clip(jnp.einsum("nhwm,om->nhwo", y, p["w2"], precision=hp)
                     + p["b2"], 0.0, 6.0)
        return jnp.transpose(o, (0, 3, 1, 2)), jnp.transpose(y, (0, 3, 1, 2))

    # --- main path: 16x16 feature map (lane-dense tiles, multi-step grid) ---
    x = jax.random.normal(k_x, (N, C_IN, H, W), dtype=jnp.float32)
    x_out, y_out = graph_path_forward(x, params)
    jax.block_until_ready((x_out, y_out))
    x_r, y_r = ref(x, params)
    assert x_out.shape == (N, C_OUT, H, W) and y_out.shape == (N, C_MID, H, W)
    assert jnp.allclose(x_out, x_r, atol=2e-5, rtol=2e-5)
    assert jnp.allclose(y_out, y_r, atol=2e-5, rtol=2e-5)

    # --- tiny-head path: 5x5 map, batch folded onto the lane axis -----------
    x_small = jax.random.normal(k_x2, (N, C_IN, 5, 5), dtype=jnp.float32)
    xs_out, ys_out = graph_path_forward(x_small, params)
    jax.block_until_ready((xs_out, ys_out))
    xs_r, ys_r = ref(x_small, params)
    assert xs_out.shape == (N, C_OUT, 5, 5) and ys_out.shape == (N, C_MID, 5, 5)
    assert jnp.allclose(xs_out, xs_r, atol=2e-5, rtol=2e-5)
    assert jnp.allclose(ys_out, ys_r, atol=2e-5, rtol=2e-5)

    print("KERNEL_OK")
</pallas_src>

<mosaic_0001>
module attributes {stable_mosaic.version = 11 : i64} {
  func.func @_graph_path_kernel(%arg0: i32, %arg1: i32, %arg2: memref<1x4x128xf32, #tpu.memory_space<vmem>>, %arg3: memref<32x4xf32, #tpu.memory_space<vmem>>, %arg4: memref<32x1xf32, #tpu.memory_space<vmem>>, %arg5: memref<8x32xf32, #tpu.memory_space<vmem>>, %arg6: memref<8x1xf32, #tpu.memory_space<vmem>>, %arg7: memref<1x32x128xf32, #tpu.memory_space<vmem>>, %arg8: memref<1x8x128xf32, #tpu.memory_space<vmem>>) attributes {dimension_semantics = [#tpu.dimension_semantics<parallel>, #tpu.dimension_semantics<parallel>], iteration_bounds = array<i64: 2, 2>, scalar_prefetch = 0 : i64, scratch_operands = 0 : i64, tpu.core_type = #tpu.core_type<tc>, window_params = [{transform_indices = @transform_0, window_bounds = array<i64: 1, 4, 128>}, {pipeline_mode = #tpu.pipeline_mode<synchronous>, transform_indices = @transform_1, window_bounds = array<i64: 32, 4>}, {pipeline_mode = #tpu.pipeline_mode<synchronous>, transform_indices = @transform_2, window_bounds = array<i64: 32, 1>}, {pipeline_mode = #tpu.pipeline_mode<synchronous>, transform_indices = @transform_3, window_bounds = array<i64: 8, 32>}, {pipeline_mode = #tpu.pipeline_mode<synchronous>, transform_indices = @transform_4, window_bounds = array<i64: 8, 1>}, {transform_indices = @transform_5, window_bounds = array<i64: 1, 32, 128>}, {transform_indices = @transform_6, window_bounds = array<i64: 1, 8, 128>}]} {
    %c0 = arith.constant 0 : index
    %c0_0 = arith.constant 0 : index
    %0 = vector.load %arg3[%c0, %c0_0] : memref<32x4xf32, #tpu.memory_space<vmem>>, vector<32x4xf32>
    %c0_1 = arith.constant 0 : index
    %c0_2 = arith.constant 0 : index
    %1 = vector.load %arg4[%c0_1, %c0_2] : memref<32x1xf32, #tpu.memory_space<vmem>>, vector<32x1xf32>
    %2 = vector.extract_strided_slice %0 {offsets = [0, 0], sizes = [32, 1], strides = [1, 1]} : vector<32x4xf32> to vector<32x1xf32>
    %c0_3 = arith.constant 0 : index
    %c0_4 = arith.constant 0 : index
    %c0_5 = arith.constant 0 : index
    %3 = vector.load %arg2[%c0_3, %c0_4, %c0_5] : memref<1x4x128xf32, #tpu.memory_space<vmem>>, vector<1x1x128xf32>
    %4 = vector.shape_cast %3 : vector<1x1x128xf32> to vector<1x128xf32>
    %5 = vector.broadcast %2 : vector<32x1xf32> to vector<32x128xf32>
    %6 = vector.broadcast %4 : vector<1x128xf32> to vector<32x128xf32>
    %7 = arith.mulf %5, %6 : vector<32x128xf32>
    %8 = vector.broadcast %1 : vector<32x1xf32> to vector<32x128xf32>
    %9 = arith.addf %8, %7 : vector<32x128xf32>
    %10 = vector.extract_strided_slice %0 {offsets = [0, 1], sizes = [32, 1], strides = [1, 1]} : vector<32x4xf32> to vector<32x1xf32>
    %c0_6 = arith.constant 0 : index
    %c1 = arith.constant 1 : index
    %c0_7 = arith.constant 0 : index
    %11 = vector.load %arg2[%c0_6, %c1, %c0_7] : memref<1x4x128xf32, #tpu.memory_space<vmem>>, vector<1x1x128xf32>
    %12 = vector.shape_cast %11 : vector<1x1x128xf32> to vector<1x128xf32>
    %13 = vector.broadcast %10 : vector<32x1xf32> to vector<32x128xf32>
    %14 = vector.broadcast %12 : vector<1x128xf32> to vector<32x128xf32>
    %15 = arith.mulf %13, %14 : vector<32x128xf32>
    %16 = arith.addf %9, %15 : vector<32x128xf32>
    %17 = vector.extract_strided_slice %0 {offsets = [0, 2], sizes = [32, 1], strides = [1, 1]} : vector<32x4xf32> to vector<32x1xf32>
    %c0_8 = arith.constant 0 : index
    %c2 = arith.constant 2 : index
    %c0_9 = arith.constant 0 : index
    %18 = vector.load %arg2[%c0_8, %c2, %c0_9] : memref<1x4x128xf32, #tpu.memory_space<vmem>>, vector<1x1x128xf32>
    %19 = vector.shape_cast %18 : vector<1x1x128xf32> to vector<1x128xf32>
    %20 = vector.broadcast %17 : vector<32x1xf32> to vector<32x128xf32>
    %21 = vector.broadcast %19 : vector<1x128xf32> to vector<32x128xf32>
    %22 = arith.mulf %20, %21 : vector<32x128xf32>
    %23 = arith.addf %16, %22 : vector<32x128xf32>
    %24 = vector.extract_strided_slice %0 {offsets = [0, 3], sizes = [32, 1], strides = [1, 1]} : vector<32x4xf32> to vector<32x1xf32>
    %c0_10 = arith.constant 0 : index
    %c3 = arith.constant 3 : index
    %c0_11 = arith.constant 0 : index
    %25 = vector.load %arg2[%c0_10, %c3, %c0_11] : memref<1x4x128xf32, #tpu.memory_space<vmem>>, vector<1x1x128xf32>
    %26 = vector.shape_cast %25 : vector<1x1x128xf32> to vector<1x128xf32>
    %27 = vector.broadcast %24 : vector<32x1xf32> to vector<32x128xf32>
    %28 = vector.broadcast %26 : vector<1x128xf32> to vector<32x128xf32>
    %29 = arith.mulf %27, %28 : vector<32x128xf32>
    %30 = arith.addf %23, %29 : vector<32x128xf32>
    %cst = arith.constant 0.000000e+00 : f32
    %cst_12 = arith.constant 6.000000e+00 : f32
    %31 = vector.broadcast %cst : f32 to vector<32x128xf32>
    %32 = arith.maximumf %31, %30 : vector<32x128xf32>
    %33 = vector.broadcast %cst_12 : f32 to vector<32x128xf32>
    %34 = arith.minimumf %33, %32 : vector<32x128xf32>
    %c0_13 = arith.constant 0 : index
    %c0_14 = arith.constant 0 : index
    %c0_15 = arith.constant 0 : index
    %35 = vector.load %arg7[%c0_13, %c0_14, %c0_15] : memref<1x32x128xf32, #tpu.memory_space<vmem>>, vector<1x32x128xf32>
    %36 = vector.shape_cast %35 : vector<1x32x128xf32> to vector<32x128xf32>
    %37 = vector.shape_cast %34 : vector<32x128xf32> to vector<1x32x128xf32>
    tpu.vector_store %arg7[%c0_13, %c0_14, %c0_15], %37 {strides = array<i32>} : memref<1x32x128xf32, #tpu.memory_space<vmem>>, vector<1x32x128xf32>,
    %c0_16 = arith.constant 0 : index
    %c0_17 = arith.constant 0 : index
    %38 = vector.load %arg5[%c0_16, %c0_17] : memref<8x32xf32, #tpu.memory_space<vmem>>, vector<8x32xf32>
    %c0_18 = arith.constant 0 : index
    %c0_19 = arith.constant 0 : index
    %39 = vector.load %arg6[%c0_18, %c0_19] : memref<8x1xf32, #tpu.memory_space<vmem>>, vector<8x1xf32>
    %c0_20 = arith.constant 0 : index
    %c0_21 = arith.constant 0 : index
    %c0_22 = arith.constant 0 : index
    %40 = vector.load %arg7[%c0_20, %c0_21, %c0_22] : memref<1x32x128xf32, #tpu.memory_space<vmem>>, vector<1x32x128xf32>
    %41 = vector.shape_cast %40 : vector<1x32x128xf32> to vector<32x128xf32>
    %cst_23 = arith.constant dense<0.000000e+00> : vector<8x128xf32>
    %42 = tpu.matmul %38, %41, %cst_23 {dimension_numbers = #tpu.dot_dimension_numbers<[1], [0], [0], [1], [0, 0, 1, 1], [], []>, precision = #tpu.contract_precision<fp32>} : vector<8x32xf32>, vector<32x128xf32>, vector<8x128xf32> -> vector<8x128xf32>
    %43 = vector.broadcast %39 : vector<8x1xf32> to vector<8x128xf32>
    %44 = arith.addf %42, %43 : vector<8x128xf32>
    %cst_24 = arith.constant 0.000000e+00 : f32
    %cst_25 = arith.constant 6.000000e+00 : f32
    %45 = vector.broadcast %cst_24 : f32 to vector<8x128xf32>
    %46 = arith.maximumf %45, %44 : vector<8x128xf32>
    %47 = vector.broadcast %cst_25 : f32 to vector<8x128xf32>
    %48 = arith.minimumf %47, %46 : vector<8x128xf32>
    %c0_26 = arith.constant 0 : index
    %c0_27 = arith.constant 0 : index
    %c0_28 = arith.constant 0 : index
    %49 = vector.load %arg8[%c0_26, %c0_27, %c0_28] : memref<1x8x128xf32, #tpu.memory_space<vmem>>, vector<1x8x128xf32>
    %50 = vector.shape_cast %49 : vector<1x8x128xf32> to vector<8x128xf32>
    %51 = vector.shape_cast %48 : vector<8x128xf32> to vector<1x8x128xf32>
    tpu.vector_store %arg8[%c0_26, %c0_27, %c0_28], %51 {strides = array<i32>} : memref<1x8x128xf32, #tpu.memory_space<vmem>>, vector<1x8x128xf32>,
    return
  }
  func.func @transform_0(%arg0: i32, %arg1: i32) -> (i32, i32, i32) {
    %c0_i32 = arith.constant 0 : i32
    %c0_i32_0 = arith.constant 0 : i32
    return %arg0, %c0_i32, %arg1 : i32, i32, i32
  }
  func.func @transform_1(%arg0: i32, %arg1: i32) -> (i32, i32) {
    %c0_i32 = arith.constant 0 : i32
    %c0_i32_0 = arith.constant 0 : i32
    %c0_i32_1 = arith.constant 0 : i32
    return %c0_i32, %c0_i32_0 : i32, i32
  }
  func.func @transform_2(%arg0: i32, %arg1: i32) -> (i32, i32) {
    %c0_i32 = arith.constant 0 : i32
    %c0_i32_0 = arith.constant 0 : i32
    %c0_i32_1 = arith.constant 0 : i32
    return %c0_i32, %c0_i32_0 : i32, i32
  }
  func.func @transform_3(%arg0: i32, %arg1: i32) -> (i32, i32) {
    %c0_i32 = arith.constant 0 : i32
    %c0_i32_0 = arith.constant 0 : i32
    %c0_i32_1 = arith.constant 0 : i32
    return %c0_i32, %c0_i32_0 : i32, i32
  }
  func.func @transform_4(%arg0: i32, %arg1: i32) -> (i32, i32) {
    %c0_i32 = arith.constant 0 : i32
    %c0_i32_0 = arith.constant 0 : i32
    %c0_i32_1 = arith.constant 0 : i32
    return %c0_i32, %c0_i32_0 : i32, i32
  }
  func.func @transform_5(%arg0: i32, %arg1: i32) -> (i32, i32, i32) {
    %c0_i32 = arith.constant 0 : i32
    %c0_i32_0 = arith.constant 0 : i32
    return %arg0, %c0_i32, %arg1 : i32, i32, i32
  }
  func.func @transform_6(%arg0: i32, %arg1: i32) -> (i32, i32, i32) {
    %c0_i32 = arith.constant 0 : i32
    %c0_i32_0 = arith.constant 0 : i32
    return %arg0, %c0_i32, %arg1 : i32, i32, i32
  }
}

</mosaic_0001>

<llo_original>
// kernel: graph_path_forward.1
$region0: #{graph_path_forward.1}
  #allocation0 [shape = 'u32[]', space=smem, size = 0x4, offset = 0x4, fixed_abs, tag = 'smem constant byte address 0x4 - core index']
  #allocation1 [shape = 'u32[144,128]{1,0:T(1,128)}', space=vmem, size = 0x12000, scoped, tag = 'internal scratch']
  %s0 = inlined_call_operand.vmem [shape: f32[2,4,256], index: 0, kind: input, shape index: {}]
  %s1 = inlined_call_operand.vmem [shape: f32[32,4], index: 1, kind: input, shape index: {}]
  %s2 = inlined_call_operand.vmem [shape: f32[32,1], index: 2, kind: input, shape index: {}]
  %s3 = inlined_call_operand.vmem [shape: f32[8,32], index: 3, kind: input, shape index: {}]
  %s4 = inlined_call_operand.vmem [shape: f32[8,1], index: 4, kind: input, shape index: {}]
  %s5 = inlined_call_operand.vmem [shape: f32[2,32,256], index: 5, kind: output, shape index: {0}]
  %s6 = inlined_call_operand.vmem [shape: f32[2,8,256], index: 6, kind: output, shape index: {1}]
  %7 = xla_tuple %s5, %s6
  %s8 = sld [smem:[#allocation0]]
  $region95: #{graph_path_forward.1} parent=0
    _
  %s10 = ssub.s32 1, %s8
  %s11 = scalar_select 0, %s10, %s8
  $region1: #{graph_path_forward.1} parent=0
    #allocation2 [shape = 'u8[32768]{0}', space=vmem, size = 0x8000, scoped, tag = 'output window, operand 0']
    loop: start=0, step=1, limit=6
    $region2: #{graph_path_forward.1} parent=1 // loop_pre_header
      _
    $region3: #{graph_path_forward.1} parent=1 // loop_header
      %s13 = sphi 0, %s17
      %p14 = scmp.ge.s32.totalorder %s13, 6
      %s20 = sphi 0, %s32
      %s21 = sphi 0, %s28
      %s22 = sphi 0, %s20
      %s23 = sphi 0, %s21
      %s24 = sphi 0, %s22
      %s25 = sphi 0, %s23
      %s37 = sphi 0, %s39
      %s40 = sphi 0, %s37
      %s41 = sphi 0, %s40
      %s57 = sphi 0, %s41
      %s61 = sphi 0, %s61
      %s63 = sphi 0, %s61
      %s64 = sphi 0, %s63
      %s78 = sphi 0, %s64
      %s82 = sphi 0, %s82
      %s84 = sphi 0, %s82
      %s85 = sphi 0, %s84
      %s99 = sphi 0, %s85
      %s103 = sphi 0, %s103
      %s105 = sphi 0, %s103
      %s106 = sphi 0, %s105
      %s120 = sphi 0, %s106
      %s124 = sphi 0, %s124
      %s126 = sphi 0, %s124
      %s127 = sphi 0, %s126
      %s141 = sphi 0, %s127
      %s149 = sphi 0, %s151
      %s152 = sphi 0, %s149
      %s153 = sphi 0, %s152
      %s169 = sphi 0, %s153
      %s177 = sphi 0, %s179
      %s180 = sphi 0, %s177
      %s181 = sphi 0, %s180
      %s197 = sphi 0, %s181
    $region4: #{graph_path_forward.1} parent=1 // loop_header_branch
      %16 = sbr.rel (%p14) target = $region8
    $region5: #{graph_path_forward.1} parent=1 // loop_body
      %s18 = ssub.s32 %s13, 1
      %s19 = ssub.s32 %s13, 2
      %s26 = sadd.s32 1, %s21
      %p27 = scmp.ge.s32.totalorder %s26, 2
      %s28 = scalar_select %p27, 0, %s26
      %s29 = sadd.s32 1, %s20
      %s30 = scalar_select %p27, %s29, %s20
      %p31 = scmp.ge.s32.totalorder %s30, 2
      %s32 = scalar_select %p31, 0, %s30
      %s33 = ssub.s32 %s20, %s32
      %s34 = ssub.s32 %s21, %s28
      %s35 = sor.u32 %s33, %s34
      %p36 = scmp.eq.s32.totalorder %s35, 0
      %s38 = sadd.s32 %s37, 1
      %s39 = scalar_select %p36, %s37, %s38
      %p42 = pneg %p36
      %p43 = scmp.eq.s32.totalorder %s13, 3
      %p44 = por %p42, %p43
      %p45 = scmp.ne.s32.totalorder %s37, %s40
      %p46 = scmp.eq.s32.totalorder %s13, 0
      %p47 = por %p45, %p46
      %p48 = scmp.ne.s32.totalorder %s37, %s40
      %p49 = scmp.eq.s32.totalorder %s18, 3
      %p50 = por %p48, %p49
      %p51 = scmp.ne.s32.totalorder %s40, %s41
      %p52 = scmp.eq.s32.totalorder %s18, 0
      %p53 = por %p51, %p52
      %p54 = scmp.ne.s32.totalorder %s40, %s41
      %p55 = scmp.eq.s32.totalorder %s19, 3
      %p56 = por %p54, %p55
      %p58 = scmp.ne.s32.totalorder %s41, %s57
      %p59 = scmp.eq.s32.totalorder %s19, 0
      %p60 = por %p58, %p59
      %s62 = sadd.s32 %s61, 1
      %p65 = scmp.eq.s32.totalorder %s13, 3
      %p66 = scmp.ne.s32.totalorder %s61, %s63
      %p67 = scmp.eq.s32.totalorder %s13, 0
      %p68 = por %p66, %p67
      %p69 = scmp.ne.s32.totalorder %s61, %s63
      %p70 = scmp.eq.s32.totalorder %s18, 3
      %p71 = por %p69, %p70
      %p72 = scmp.ne.s32.totalorder %s63, %s64
      %p73 = scmp.eq.s32.totalorder %s18, 0
      %p74 = por %p72, %p73
      %p75 = scmp.ne.s32.totalorder %s63, %s64
      %p76 = scmp.eq.s32.totalorder %s19, 3
      %p77 = por %p75, %p76
      %p79 = scmp.ne.s32.totalorder %s64, %s78
      %p80 = scmp.eq.s32.totalorder %s19, 0
      %p81 = por %p79, %p80
      %s83 = sadd.s32 %s82, 1
      %p86 = scmp.eq.s32.totalorder %s13, 3
      %p87 = scmp.ne.s32.totalorder %s82, %s84
      %p88 = scmp.eq.s32.totalorder %s13, 0
      %p89 = por %p87, %p88
      %p90 = scmp.ne.s32.totalorder %s82, %s84
      %p91 = scmp.eq.s32.totalorder %s18, 3
      %p92 = por %p90, %p91
      %p93 = scmp.ne.s32.totalorder %s84, %s85
      %p94 = scmp.eq.s32.totalorder %s18, 0
      %p95 = por %p93, %p94
      %p96 = scmp.ne.s32.totalorder %s84, %s85
      %p97 = scmp.eq.s32.totalorder %s19, 3
      %p98 = por %p96, %p97
      %p100 = scmp.ne.s32.totalorder %s85, %s99
      %p101 = scmp.eq.s32.totalorder %s19, 0
      %p102 = por %p100, %p101
      %s104 = sadd.s32 %s103, 1
      %p107 = scmp.eq.s32.totalorder %s13, 3
      %p108 = scmp.ne.s32.totalorder %s103, %s105
      %p109 = scmp.eq.s32.totalorder %s13, 0
      %p110 = por %p108, %p109
      %p111 = scmp.ne.s32.totalorder %s103, %s105
      %p112 = scmp.eq.s32.totalorder %s18, 3
      %p113 = por %p111, %p112
      %p114 = scmp.ne.s32.totalorder %s105, %s106
      %p115 = scmp.eq.s32.totalorder %s18, 0
      %p116 = por %p114, %p115
      %p117 = scmp.ne.s32.totalorder %s105, %s106
      %p118 = scmp.eq.s32.totalorder %s19, 3
      %p119 = por %p117, %p118
      %p121 = scmp.ne.s32.totalorder %s106, %s120
      %p122 = scmp.eq.s32.totalorder %s19, 0
      %p123 = por %p121, %p122
      %s125 = sadd.s32 %s124, 1
      %p128 = scmp.eq.s32.totalorder %s13, 3
      %p129 = scmp.ne.s32.totalorder %s124, %s126
      %p130 = scmp.eq.s32.totalorder %s13, 0
      %p131 = por %p129, %p130
      %p132 = scmp.ne.s32.totalorder %s124, %s126
      %p133 = scmp.eq.s32.totalorder %s18, 3
      %p134 = por %p132, %p133
      %p135 = scmp.ne.s32.totalorder %s126, %s127
      %p136 = scmp.eq.s32.totalorder %s18, 0
      %p137 = por %p135, %p136
      %p138 = scmp.ne.s32.totalorder %s126, %s127
      %p139 = scmp.eq.s32.totalorder %s19, 3
      %p140 = por %p138, %p139
      %p142 = scmp.ne.s32.totalorder %s127, %s141
      %p143 = scmp.eq.s32.totalorder %s19, 0
      %p144 = por %p142, %p143
      %s145 = ssub.s32 %s20, %s32
      %s146 = ssub.s32 %s21, %s28
      %s147 = sor.u32 %s145, %s146
      %p148 = scmp.eq.s32.totalorder %s147, 0
      %s150 = sadd.s32 %s149, 1
      %s151 = scalar_select %p148, %s149, %s150
      %p154 = pneg %p148
      %p155 = scmp.eq.s32.totalorder %s13, 3
      %p156 = por %p154, %p155
      %p157 = scmp.ne.s32.totalorder %s149, %s152
      %p158 = scmp.eq.s32.totalorder %s13, 0
      %p159 = por %p157, %p158
      %p160 = scmp.ne.s32.totalorder %s149, %s152
      %p161 = scmp.eq.s32.totalorder %s18, 3
      %p162 = por %p160, %p161
      %p163 = scmp.ne.s32.totalorder %s152, %s153
      %p164 = scmp.eq.s32.totalorder %s18, 0
      %p165 = por %p163, %p164
      %p166 = scmp.ne.s32.totalorder %s152, %s153
      %p167 = scmp.eq.s32.totalorder %s19, 3
      %p168 = por %p166, %p167
      %p170 = scmp.ne.s32.totalorder %s153, %s169
      %p171 = scmp.eq.s32.totalorder %s19, 0
      %p172 = por %p170, %p171
      %s173 = ssub.s32 %s20, %s32
      %s174 = ssub.s32 %s21, %s28
      %s175 = sor.u32 %s173, %s174
      %p176 = scmp.eq.s32.totalorder %s175, 0
      %s178 = sadd.s32 %s177, 1
      %s179 = scalar_select %p176, %s177, %s178
      %p182 = pneg %p176
      %p183 = scmp.eq.s32.totalorder %s13, 3
      %p184 = por %p182, %p183
      %p185 = scmp.ne.s32.totalorder %s177, %s180
      %p186 = scmp.eq.s32.totalorder %s13, 0
      %p187 = por %p185, %p186
      %p188 = scmp.ne.s32.totalorder %s177, %s180
      %p189 = scmp.eq.s32.totalorder %s18, 3
      %p190 = por %p188, %p189
      %p191 = scmp.ne.s32.totalorder %s180, %s181
      %p192 = scmp.eq.s32.totalorder %s18, 0
      %p193 = por %p191, %p192
      %p194 = scmp.ne.s32.totalorder %s180, %s181
      %p195 = scmp.eq.s32.totalorder %s19, 3
      %p196 = por %p194, %p195
      %p198 = scmp.ne.s32.totalorder %s181, %s197
      %p199 = scmp.eq.s32.totalorder %s19, 0
      %p200 = por %p198, %p199
      %p201 = scmp.le.s32.totalorder 1, %s13
      %p202 = scmp.lt.s32.totalorder %s13, 5
      %p203 = pnand %p201, %p202
      %p204 = pneg %p203
      // Predicated region
      $region9: #{graph_path_forward.1} parent=5 // pred_check
        _
      $region10: #{graph_path_forward.1} parent=5 // pred_check_branch
        %206 = sbr.rel (%p203) target = $region12
      $region11: #{graph_path_forward.1} parent=5 // pred_region
        %s207 = ssub.s32 %s13, 1
        // Predicated region
        $region13: #{graph_path_forward.1} parent=11 // pred_check
          %p208 = pneg %p74
        $region14: #{graph_path_forward.1} parent=11 // pred_check_branch
          %210 = sbr.rel (%p208) target = $region16
        $region15: #{graph_path_forward.1} parent=11 // pred_region
          _
        $region16: #{graph_path_forward.1} parent=11 // pred_fallthru
          _
        // Predicated region
        $region17: #{graph_path_forward.1} parent=11 // pred_check
          %p211 = pneg %p95
        $region18: #{graph_path_forward.1} parent=11 // pred_check_branch
          %213 = sbr.rel (%p211) target = $region20
        $region19: #{graph_path_forward.1} parent=11 // pred_region
          _
        $region20: #{graph_path_forward.1} parent=11 // pred_fallthru
          _
        // Predicated region
        $region21: #{graph_path_forward.1} parent=11 // pred_check
          %p214 = pneg %p116
        $region22: #{graph_path_forward.1} parent=11 // pred_check_branch
          %216 = sbr.rel (%p214) target = $region24
        $region23: #{graph_path_forward.1} parent=11 // pred_region
          _
        $region24: #{graph_path_forward.1} parent=11 // pred_fallthru
          _
        // Predicated region
        $region25: #{graph_path_forward.1} parent=11 // pred_check
          %p217 = pneg %p137
        $region26: #{graph_path_forward.1} parent=11 // pred_check_branch
          %219 = sbr.rel (%p217) target = $region28
        $region27: #{graph_path_forward.1} parent=11 // pred_region
          _
        $region28: #{graph_path_forward.1} parent=11 // pred_fallthru
          _
      $region12: #{graph_path_forward.1} parent=5 // pred_fallthru
        _
      %p220 = scmp.lt.s32.totalorder %s13, 4
      // Predicated region
      $region29: #{graph_path_forward.1} parent=5 // pred_check
        %p221 = pneg %p220
      $region30: #{graph_path_forward.1} parent=5 // pred_check_branch
        %223 = sbr.rel (%p221) target = $region32
      $region31: #{graph_path_forward.1} parent=5 // pred_region
        // Predicated region
        $region33: #{graph_path_forward.1} parent=31 // pred_check
          %p224 = pneg %p47
        $region34: #{graph_path_forward.1} parent=31 // pred_check_branch
          %226 = sbr.rel (%p224) target = $region36
        $region35: #{graph_path_forward.1} parent=31 // pred_region
          %p227 = scmp.lt.s32.totalorder %s20, 1
          %s228 = scalar_select %p227, %s20, 1
          %p229 = scmp.lt.s32.totalorder %s21, 1
          %s230 = scalar_select %p229, %s21, 1
          %s231 = smul.addr %s228, 2
          %s232 = sadd.s32 %s230, %s231
          %s233 = smul.addr %s232, 4
          %s234 = scalar_lea.vmem %s0, %s233
        $region36: #{graph_path_forward.1} parent=31 // pred_fallthru
          _
      $region32: #{graph_path_forward.1} parent=5 // pred_fallthru
        _
      %p235 = scmp.le.s32.totalorder 1, %s13
      %p236 = scmp.lt.s32.totalorder %s13, 5
      %p237 = pnand %p235, %p236
      %p238 = pneg %p237
      // Predicated region
      $region37: #{graph_path_forward.1} parent=5 // pred_check
        _
      $region38: #{graph_path_forward.1} parent=5 // pred_check_branch
        %240 = sbr.rel (%p237) target = $region40
      $region39: #{graph_path_forward.1} parent=5 // pred_region
        %s241 = ssub.s32 %s13, 1
        %p242 = scmp.lt.s32.totalorder %s22, 1
        %s243 = scalar_select %p242, %s22, 1
        %p244 = scmp.lt.s32.totalorder %s23, 1
        %s245 = scalar_select %p244, %s23, 1
        %s246 = smul.addr %s243, 2
        %s247 = sadd.s32 %s245, %s246
        %s248 = smul.addr %s247, 4
        %s249 = scalar_lea.vmem %s0, %s248
        %p250 = pneg %p53
        %p251 = pneg %p50
        %p252 = pneg %p74
        %p253 = pneg %p71
        %p254 = pneg %p95
        %p255 = pneg %p92
        %p256 = pneg %p116
        %p257 = pneg %p113
        %p258 = pneg %p137
        %p259 = pneg %p134
        %p260 = pneg %p165
        %p261 = pneg %p162
        %s262 = sand.u32 %s152, 1
        %s263 = sand.u32 %s152, 1
        %s264 = smul.addr %s263, 32
        %s265 = scalar_lea.vmem [#allocation2], %s264
        %p266 = pneg %p193
        %p267 = pneg %p190
        %p268 = scmp.lt.s32.totalorder %s22, 1
        %s269 = scalar_select %p268, %s22, 1
        %p270 = scmp.lt.s32.totalorder %s23, 1
        %s271 = scalar_select %p270, %s23, 1
        %s272 = smul.addr %s269, 2
        %s273 = sadd.s32 %s271, %s272
        %s274 = smul.addr %s273, 8
        %s275 = scalar_lea.vmem %s6, %s274
        %p276 = scmp.lt.s32.totalorder %s22, 1
        %s277 = scalar_select %p276, %s22, 1
        %p278 = scmp.lt.s32.totalorder %s23, 1
        %s279 = scalar_select %p278, %s23, 1
        %s280 = smul.addr %s277, 2
        %s281 = sadd.s32 %s279, %s280
        %s282 = smul.addr %s281, 4
        %s283 = scalar_lea.vmem %s0, %s282
        %p284 = scmp.lt.s32.totalorder %s22, 1
        %s285 = scalar_select %p284, %s22, 1
        %p286 = scmp.lt.s32.totalorder %s23, 1
        %s287 = scalar_select %p286, %s23, 1
        %s288 = smul.addr %s285, 2
        %s289 = sadd.s32 %s287, %s288
        %s290 = smul.addr %s289, 8
        %s291 = scalar_lea.vmem %s6, %s290
        %v292 = vld [vmem:[%s1] sm:$0xff]
        %v293 = vld [vmem:[%s1 + $0x8] sm:$0xff]
        %v294 = vld [vmem:[%s1 + $0x10] sm:$0xff]
        %v295 = vld [vmem:[%s1 + $0x18] sm:$0xff]
        %v296 = vld [vmem:[%s2] sm:$0xff]
        %v297 = vld [vmem:[%s2 + $0x8] sm:$0xff]
        %v298 = vld [vmem:[%s2 + $0x10] sm:$0xff]
        %v299 = vld [vmem:[%s2 + $0x18] sm:$0xff]
        %v300 = vld [vmem:[%s283] sm:$0x1]
        %302 = vset.pattern.permute.xlu0 0
        %303 = vperm.xlu0 %302, %v292
        %v304 = vpop.permute.xlu0 %303
        %307 = vset.pattern.permute.xlu0 0
        %308 = vperm.xlu0 %307, %v293
        %v309 = vpop.permute.xlu0 %308
        %312 = vset.pattern.permute.xlu0 0
        %313 = vperm.xlu0 %312, %v294
        %v314 = vpop.permute.xlu0 %313
        %317 = vset.pattern.permute.xlu0 0
        %318 = vperm.xlu0 %317, %v295
        %v319 = vpop.permute.xlu0 %318
        %v321 = vlaneseq
        %v322 = vshrl.u32 %v321, 7
        %v323 = vsub.s32 0, %v322
        %v324 = vrot.slane %v300, %v323
        %v325 = vmul.f32 %v304, %v324
        %v326 = vmul.f32 %v309, %v324
        %v327 = vmul.f32 %v314, %v324
        %v328 = vmul.f32 %v319, %v324
        %330 = vset.pattern.permute.xlu0 0
        %331 = vperm.xlu0 %330, %v296
        %v332 = vpop.permute.xlu0 %331
        %335 = vset.pattern.permute.xlu0 0
        %336 = vperm.xlu0 %335, %v297
        %v337 = vpop.permute.xlu0 %336
        %340 = vset.pattern.permute.xlu0 0
        %341 = vperm.xlu0 %340, %v298
        %v342 = vpop.permute.xlu0 %341
        %345 = vset.pattern.permute.xlu0 0
        %346 = vperm.xlu0 %345, %v299
        %v347 = vpop.permute.xlu0 %346
        %v349 = vadd.f32 %v332, %v325
        %v350 = vadd.f32 %v337, %v326
        %v351 = vadd.f32 %v342, %v327
        %v352 = vadd.f32 %v347, %v328
        %v353 = vld [vmem:[%s283 + $0x1] sm:$0x1]
        %354 = vset.pattern.permute.xlu0 1
        %355 = vperm.xlu0 %354, %v292
        %v356 = vpop.permute.xlu0 %355
        %358 = vset.pattern.permute.xlu0 1
        %359 = vperm.xlu0 %358, %v293
        %v360 = vpop.permute.xlu0 %359
        %362 = vset.pattern.permute.xlu0 1
        %363 = vperm.xlu0 %362, %v294
        %v364 = vpop.permute.xlu0 %363
        %366 = vset.pattern.permute.xlu0 1
        %367 = vperm.xlu0 %366, %v295
        %v368 = vpop.permute.xlu0 %367
        %v370 = vlaneseq
        %v371 = vshrl.u32 %v370, 7
        %v372 = vsub.s32 0, %v371
        %v373 = vrot.slane %v353, %v372
        %v374 = vmul.f32 %v356, %v373
        %v375 = vmul.f32 %v360, %v373
        %v376 = vmul.f32 %v364, %v373
        %v377 = vmul.f32 %v368, %v373
        %v378 = vadd.f32 %v349, %v374
        %v379 = vadd.f32 %v350, %v375
        %v380 = vadd.f32 %v351, %v376
        %v381 = vadd.f32 %v352, %v377
        %v382 = vld [vmem:[%s283 + $0x2] sm:$0x1]
        %383 = vset.pattern.permute.xlu0 2
        %384 = vperm.xlu0 %383, %v292
        %v385 = vpop.permute.xlu0 %384
        %387 = vset.pattern.permute.xlu0 2
        %388 = vperm.xlu0 %387, %v293
        %v389 = vpop.permute.xlu0 %388
        %391 = vset.pattern.permute.xlu0 2
        %392 = vperm.xlu0 %391, %v294
        %v393 = vpop.permute.xlu0 %392
        %395 = vset.pattern.permute.xlu0 2
        %396 = vperm.xlu0 %395, %v295
        %v397 = vpop.permute.xlu0 %396
        %v399 = vlaneseq
        %v400 = vshrl.u32 %v399, 7
        %v401 = vsub.s32 0, %v400
        %v402 = vrot.slane %v382, %v401
        %v403 = vmul.f32 %v385, %v402
        %v404 = vmul.f32 %v389, %v402
        %v405 = vmul.f32 %v393, %v402
        %v406 = vmul.f32 %v397, %v402
        %v407 = vadd.f32 %v378, %v403
        %v408 = vadd.f32 %v379, %v404
        %v409 = vadd.f32 %v380, %v405
        %v410 = vadd.f32 %v381, %v406
        %v411 = vld [vmem:[%s283 + $0x3] sm:$0x1]
        %412 = vset.pattern.permute.xlu0 3
        %413 = vperm.xlu0 %412, %v292
        %v414 = vpop.permute.xlu0 %413
        %416 = vset.pattern.permute.xlu0 3
        %417 = vperm.xlu0 %416, %v293
        %v418 = vpop.permute.xlu0 %417
        %420 = vset.pattern.permute.xlu0 3
        %421 = vperm.xlu0 %420, %v294
        %v422 = vpop.permute.xlu0 %421
        %424 = vset.pattern.permute.xlu0 3
        %425 = vperm.xlu0 %424, %v295
        %v426 = vpop.permute.xlu0 %425
        %v428 = vlaneseq
        %v429 = vshrl.u32 %v428, 7
        %v430 = vsub.s32 0, %v429
        %v431 = vrot.slane %v411, %v430
        %v432 = vmul.f32 %v414, %v431
        %v433 = vmul.f32 %v418, %v431
        %v434 = vmul.f32 %v422, %v431
        %v435 = vmul.f32 %v426, %v431
        %v436 = vadd.f32 %v407, %v432
        %v437 = vadd.f32 %v408, %v433
        %v438 = vadd.f32 %v409, %v434
        %v439 = vadd.f32 %v410, %v435
        %v440 = vmax.f32 %v436, 0.0
        %v441 = vmax.f32 %v437, 0.0
        %v442 = vmax.f32 %v438, 0.0
        %v443 = vmax.f32 %v439, 0.0
        %v444 = vmin.f32 %v440, 6.0
        %v445 = vmin.f32 %v441, 6.0
        %v446 = vmin.f32 %v442, 6.0
        %v447 = vmin.f32 %v443, 6.0
        %448 = vst [vmem:[%s265] sm:$0xff] %v444
        %449 = vst [vmem:[%s265 + $0x8] sm:$0xff] %v445
        %450 = vst [vmem:[%s265 + $0x10] sm:$0xff] %v446
        %451 = vst [vmem:[%s265 + $0x18] sm:$0xff] %v447
        %v452 = vld [vmem:[%s3] sm:$0xff]
        %v453 = vld [vmem:[%s4] sm:$0xff]
        %v454 = vld [vmem:[%s265] sm:$0xff]
        %v455 = vld [vmem:[%s265 + $0x8] sm:$0xff]
        %v456 = vld [vmem:[%s265 + $0x10] sm:$0xff]
        %v457 = vld [vmem:[%s265 + $0x18] sm:$0xff]
        %459 = vset.pattern.permute.xlu0 0
        %460 = vperm.xlu0 %459, %v453
        %v461 = vpop.permute.xlu0 %460
        %vm463 = vcmask 261120
        %v465 = vsel %vm463, %v452, 0
        %467 = vmatprep.subr.mxu0 0.0
        %v468 = vand.u32 %v454, 4294901760
        %469 = vmatpush1.msra.mxu0 %v468
        %470 = vmatprep.subr.mxu0 0.0
        %v471 = vand.u32 %v455, 4294901760
        %472 = vmatpush1.msra.mxu0 %v471
        %473 = vmatprep.subr.mxu0 0.0
        %v474 = vand.u32 %v456, 4294901760
        %475 = vmatpush1.msra.mxu0 %v474
        %476 = vmatprep.subr.mxu0 0.0
        %v477 = vand.u32 %v457, 4294901760
        %478 = vmatpush1.msra.mxu0 %v477
        %479 = vmatprep.subr.mxu0 0.0
        %480 = vmatpush1.msra.mxu0 0.0
        %481 = vmatprep.subr.mxu0 0.0
        %482 = vmatpush1.msra.mxu0 0.0
        %483 = vmatprep.subr.mxu0 0.0
        %484 = vmatpush1.msra.mxu0 0.0
        %485 = vmatprep.subr.mxu0 0.0
        %486 = vmatpush1.msra.mxu0 0.0
        %487 = vmatprep.subr.mxu0 0.0
        %488 = vmatpush1.msra.mxu0 0.0
        %489 = vmatprep.subr.mxu0 0.0
        %490 = vmatpush1.msra.mxu0 0.0
        %491 = vmatprep.subr.mxu0 0.0
        %492 = vmatpush1.msra.mxu0 0.0
        %493 = vmatprep.subr.mxu0 0.0
        %494 = vmatpush1.msra.mxu0 0.0
        %495 = vmatprep.subr.mxu0 0.0
        %496 = vmatpush1.msra.mxu0 0.0
        %497 = vmatprep.subr.mxu0 0.0
        %498 = vmatpush1.msra.mxu0 0.0
        %499 = vmatprep.subr.mxu0 0.0
        %500 = vmatpush1.msra.mxu0 0.0
        %501 = vmatprep.subr.mxu0 0.0
        %502 = vmatpush1.msra.mxu0 0.0
        %503 = vmatprep.subr.mxu0 0.0
        %504 = vmatpush1.msra.mxu0 0.0
        %505 = vmatprep.subr.mxu0 0.0
        %506 = vmatpush1.msra.mxu0 0.0
        %507 = vmatprep.subr.mxu0 0.0
        %508 = vmatpush1.msra.mxu0 0.0
        %509 = vmatprep.subr.mxu0 0.0
        %510 = vmatpush1.msra.mxu0 0.0
        %511 = vmatprep.subr.mxu0 0.0
        %512 = vmatpush1.msra.mxu0 0.0
        %513 = vmatprep.subr.mxu0 0.0
        %514 = vmatpush1.msra.mxu0 0.0
        %515 = vmatprep.subr.mxu0 0.0
        %516 = vmatpush1.msra.mxu0 0.0
        %517 = vmatprep.subr.mxu0 0.0
        %518 = vmatpush1.msra.mxu0 0.0
        %519 = vmatprep.subr.mxu0 0.0
        %520 = vmatpush1.msra.mxu0 0.0
        %521 = vmatprep.subr.mxu0 0.0
        %522 = vmatpush1.msra.mxu0 0.0
        %523 = vmatprep.subr.mxu0 0.0
        %524 = vmatpush1.msra.mxu0 0.0
        %525 = vmatprep.subr.mxu0 0.0
        %526 = vmatpush1.msra.mxu0 0.0
        %527 = vmatprep.subr.mxu0 0.0
        %528 = vmatpush1.msra.mxu0 0.0
        %529 = vmatprep.subr.mxu0 0.0
        %530 = vmatpush1.msra.mxu0 0.0
        %531 = vmatprep.subr.mxu0 0.0
        %532 = vmatpush1.msra.mxu0 0.0
        %533 = vmatprep.subr.mxu0 0.0
        %534 = vmatpush1.msra.mxu0 0.0
        %535 = vmatprep.mubr.f32.mxu0 0.0
        %v536 = vand.u32 %v465, 4294901760
        %v537 = vsub.f32 %v465, %v536
        %v538 = vand.u32 %v537, 4294901760
        %v539 = vsub.f32 %v537, %v538
        %v540 = vand.u32 %v539, 4294901760
        %541 = vmatmul.mubr.f32.gmra.mrb[0].mxu0 %v540
        %v542 = vpop.f32.mrb[0].mxu0
        %v543 = vadd.f32 %v461, %v542
        %v544 = vpop.f32.mrb[0].mxu0
        %545 = vdwg.mxu0
        %546 = vmatprep.subr.mxu0 0.0
        %v547 = vand.u32 %v454, 4294901760
        %v548 = vsub.f32 %v454, %v547
        %v549 = vand.u32 %v548, 4294901760
        %v550 = vsub.f32 %v548, %v549
        %v551 = vand.u32 %v550, 4294901760
        %552 = vmatpush1.msra.mxu0 %v551
        %553 = vmatprep.subr.mxu0 0.0
        %v554 = vand.u32 %v455, 4294901760
        %v555 = vsub.f32 %v455, %v554
        %v556 = vand.u32 %v555, 4294901760
        %v557 = vsub.f32 %v555, %v556
        %v558 = vand.u32 %v557, 4294901760
        %559 = vmatpush1.msra.mxu0 %v558
        %560 = vmatprep.subr.mxu0 0.0
        %v561 = vand.u32 %v456, 4294901760
        %v562 = vsub.f32 %v456, %v561
        %v563 = vand.u32 %v562, 4294901760
        %v564 = vsub.f32 %v562, %v563
        %v565 = vand.u32 %v564, 4294901760
        %566 = vmatpush1.msra.mxu0 %v565
        %567 = vmatprep.subr.mxu0 0.0
        %v568 = vand.u32 %v457, 4294901760
        %v569 = vsub.f32 %v457, %v568
        %v570 = vand.u32 %v569, 4294901760
        %v571 = vsub.f32 %v569, %v570
        %v572 = vand.u32 %v571, 4294901760
        %573 = vmatpush1.msra.mxu0 %v572
        %574 = vmatprep.subr.mxu0 0.0
        %575 = vmatpush1.msra.mxu0 0.0
        %576 = vmatprep.subr.mxu0 0.0
        %577 = vmatpush1.msra.mxu0 0.0
        %578 = vmatprep.subr.mxu0 0.0
        %579 = vmatpush1.msra.mxu0 0.0
        %580 = vmatprep.subr.mxu0 0.0
        %581 = vmatpush1.msra.mxu0 0.0
        %582 = vmatprep.subr.mxu0 0.0
        %583 = vmatpush1.msra.mxu0 0.0
        %584 = vmatprep.subr.mxu0 0.0
        %585 = vmatpush1.msra.mxu0 0.0
        %586 = vmatprep.subr.mxu0 0.0
        %587 = vmatpush1.msra.mxu0 0.0
        %588 = vmatprep.subr.mxu0 0.0
        %589 = vmatpush1.msra.mxu0 0.0
        %590 = vmatprep.subr.mxu0 0.0
        %591 = vmatpush1.msra.mxu0 0.0
        %592 = vmatprep.subr.mxu0 0.0
        %593 = vmatpush1.msra.mxu0 0.0
        %594 = vmatprep.subr.mxu0 0.0
        %595 = vmatpush1.msra.mxu0 0.0
        %596 = vmatprep.subr.mxu0 0.0
        %597 = vmatpush1.msra.mxu0 0.0
        %598 = vmatprep.subr.mxu0 0.0
        %599 = vmatpush1.msra.mxu0 0.0
        %600 = vmatprep.subr.mxu0 0.0
        %601 = vmatpush1.msra.mxu0 0.0
        %602 = vmatprep.subr.mxu0 0.0
        %603 = vmatpush1.msra.mxu0 0.0
        %604 = vmatprep.subr.mxu0 0.0
        %605 = vmatpush1.msra.mxu0 0.0
        %606 = vmatprep.subr.mxu0 0.0
        %607 = vmatpush1.msra.mxu0 0.0
        %608 = vmatprep.subr.mxu0 0.0
        %609 = vmatpush1.msra.mxu0 0.0
        %610 = vmatprep.subr.mxu0 0.0
        %611 = vmatpush1.msra.mxu0 0.0
        %612 = vmatprep.subr.mxu0 0.0
        %613 = vmatpush1.msra.mxu0 0.0
        %614 = vmatprep.subr.mxu0 0.0
        %615 = vmatpush1.msra.mxu0 0.0
        %616 = vmatprep.subr.mxu0 0.0
        %617 = vmatpush1.msra.mxu0 0.0
        %618 = vmatprep.subr.mxu0 0.0
        %619 = vmatpush1.msra.mxu0 0.0
        %620 = vmatprep.subr.mxu0 0.0
        %621 = vmatpush1.msra.mxu0 0.0
        %622 = vmatprep.subr.mxu0 0.0
        %623 = vmatpush1.msra.mxu0 0.0
        %624 = vmatprep.subr.mxu0 0.0
        %625 = vmatpush1.msra.mxu0 0.0
        %626 = vmatprep.subr.mxu0 0.0
        %627 = vmatpush1.msra.mxu0 0.0
        %628 = vmatprep.subr.mxu0 0.0
        %629 = vmatpush1.msra.mxu0 0.0
        %630 = vmatprep.mubr.f32.mxu0 0.0
        %v631 = vand.u32 %v465, 4294901760
        %632 = vmatmul.mubr.f32.gmra.mrb[0].mxu0 %v631
        %v633 = vpop.f32.mrb[0].mxu0
        %v634 = vadd.f32 %v543, %v633
        %v635 = vpop.f32.mrb[0].mxu0
        %636 = vdwg.mxu0
        %637 = vmatprep.subr.mxu0 0.0
        %v638 = vand.u32 %v454, 4294901760
        %v639 = vsub.f32 %v454, %v638
        %640 = vmatpush1.msra.mxu0 %v639
        %641 = vmatprep.subr.mxu0 0.0
        %v642 = vand.u32 %v455, 4294901760
        %v643 = vsub.f32 %v455, %v642
        %644 = vmatpush1.msra.mxu0 %v643
        %645 = vmatprep.subr.mxu0 0.0
        %v646 = vand.u32 %v456, 4294901760
        %v647 = vsub.f32 %v456, %v646
        %648 = vmatpush1.msra.mxu0 %v647
        %649 = vmatprep.subr.mxu0 0.0
        %v650 = vand.u32 %v457, 4294901760
        %v651 = vsub.f32 %v457, %v650
        %652 = vmatpush1.msra.mxu0 %v651
        %653 = vmatprep.subr.mxu0 0.0
        %654 = vmatpush1.msra.mxu0 0.0
        %655 = vmatprep.subr.mxu0 0.0
        %656 = vmatpush1.msra.mxu0 0.0
        %657 = vmatprep.subr.mxu0 0.0
        %658 = vmatpush1.msra.mxu0 0.0
        %659 = vmatprep.subr.mxu0 0.0
        %660 = vmatpush1.msra.mxu0 0.0
        %661 = vmatprep.subr.mxu0 0.0
        %662 = vmatpush1.msra.mxu0 0.0
        %663 = vmatprep.subr.mxu0 0.0
        %664 = vmatpush1.msra.mxu0 0.0
        %665 = vmatprep.subr.mxu0 0.0
        %666 = vmatpush1.msra.mxu0 0.0
        %667 = vmatprep.subr.mxu0 0.0
        %668 = vmatpush1.msra.mxu0 0.0
        %669 = vmatprep.subr.mxu0 0.0
        %670 = vmatpush1.msra.mxu0 0.0
        %671 = vmatprep.subr.mxu0 0.0
        %672 = vmatpush1.msra.mxu0 0.0
        %673 = vmatprep.subr.mxu0 0.0
        %674 = vmatpush1.msra.mxu0 0.0
        %675 = vmatprep.subr.mxu0 0.0
        %676 = vmatpush1.msra.mxu0 0.0
        %677 = vmatprep.subr.mxu0 0.0
        %678 = vmatpush1.msra.mxu0 0.0
        %679 = vmatprep.subr.mxu0 0.0
        %680 = vmatpush1.msra.mxu0 0.0
        %681 = vmatprep.subr.mxu0 0.0
        %682 = vmatpush1.msra.mxu0 0.0
        %683 = vmatprep.subr.mxu0 0.0
        %684 = vmatpush1.msra.mxu0 0.0
        %685 = vmatprep.subr.mxu0 0.0
        %686 = vmatpush1.msra.mxu0 0.0
        %687 = vmatprep.subr.mxu0 0.0
        %688 = vmatpush1.msra.mxu0 0.0
        %689 = vmatprep.subr.mxu0 0.0
        %690 = vmatpush1.msra.mxu0 0.0
        %691 = vmatprep.subr.mxu0 0.0
        %692 = vmatpush1.msra.mxu0 0.0
        %693 = vmatprep.subr.mxu0 0.0
        %694 = vmatpush1.msra.mxu0 0.0
        %695 = vmatprep.subr.mxu0 0.0
        %696 = vmatpush1.msra.mxu0 0.0
        %697 = vmatprep.subr.mxu0 0.0
        %698 = vmatpush1.msra.mxu0 0.0
        %699 = vmatprep.subr.mxu0 0.0
        %700 = vmatpush1.msra.mxu0 0.0
        %701 = vmatprep.subr.mxu0 0.0
        %702 = vmatpush1.msra.mxu0 0.0
        %703 = vmatprep.subr.mxu0 0.0
        %704 = vmatpush1.msra.mxu0 0.0
        %705 = vmatprep.subr.mxu0 0.0
        %706 = vmatpush1.msra.mxu0 0.0
        %707 = vmatprep.subr.mxu0 0.0
        %708 = vmatpush1.msra.mxu0 0.0
        %709 = vmatprep.mubr.f32.mxu0 0.0
        %v710 = vand.u32 %v465, 4294901760
        %v711 = vsub.f32 %v465, %v710
        %712 = vmatmul.mubr.f32.gmra.mrb[0].mxu0 %v711
        %v713 = vpop.f32.mrb[0].mxu0
        %v714 = vadd.f32 %v634, %v713
        %v715 = vpop.f32.mrb[0].mxu0
        %716 = vdwg.mxu0
        %717 = vmatprep.subr.mxu0 0.0
        %v718 = vand.u32 %v454, 4294901760
        %719 = vmatpush1.msra.mxu0 %v718
        %720 = vmatprep.subr.mxu0 0.0
        %v721 = vand.u32 %v455, 4294901760
        %722 = vmatpush1.msra.mxu0 %v721
        %723 = vmatprep.subr.mxu0 0.0
        %v724 = vand.u32 %v456, 4294901760
        %725 = vmatpush1.msra.mxu0 %v724
        %726 = vmatprep.subr.mxu0 0.0
        %v727 = vand.u32 %v457, 4294901760
        %728 = vmatpush1.msra.mxu0 %v727
        %729 = vmatprep.subr.mxu0 0.0
        %730 = vmatpush1.msra.mxu0 0.0
        %731 = vmatprep.subr.mxu0 0.0
        %732 = vmatpush1.msra.mxu0 0.0
        %733 = vmatprep.subr.mxu0 0.0
        %734 = vmatpush1.msra.mxu0 0.0
        %735 = vmatprep.subr.mxu0 0.0
        %736 = vmatpush1.msra.mxu0 0.0
        %737 = vmatprep.subr.mxu0 0.0
        %738 = vmatpush1.msra.mxu0 0.0
        %739 = vmatprep.subr.mxu0 0.0
        %740 = vmatpush1.msra.mxu0 0.0
        %741 = vmatprep.subr.mxu0 0.0
        %742 = vmatpush1.msra.mxu0 0.0
        %743 = vmatprep.subr.mxu0 0.0
        %744 = vmatpush1.msra.mxu0 0.0
        %745 = vmatprep.subr.mxu0 0.0
        %746 = vmatpush1.msra.mxu0 0.0
        %747 = vmatprep.subr.mxu0 0.0
        %748 = vmatpush1.msra.mxu0 0.0
        %749 = vmatprep.subr.mxu0 0.0
        %750 = vmatpush1.msra.mxu0 0.0
        %751 = vmatprep.subr.mxu0 0.0
        %752 = vmatpush1.msra.mxu0 0.0
        %753 = vmatprep.subr.mxu0 0.0
        %754 = vmatpush1.msra.mxu0 0.0
        %755 = vmatprep.subr.mxu0 0.0
        %756 = vmatpush1.msra.mxu0 0.0
        %757 = vmatprep.subr.mxu0 0.0
        %758 = vmatpush1.msra.mxu0 0.0
        %759 = vmatprep.subr.mxu0 0.0
        %760 = vmatpush1.msra.mxu0 0.0
        %761 = vmatprep.subr.mxu0 0.0
        %762 = vmatpush1.msra.mxu0 0.0
        %763 = vmatprep.subr.mxu0 0.0
        %764 = vmatpush1.msra.mxu0 0.0
        %765 = vmatprep.subr.mxu0 0.0
        %766 = vmatpush1.msra.mxu0 0.0
        %767 = vmatprep.subr.mxu0 0.0
        %768 = vmatpush1.msra.mxu0 0.0
        %769 = vmatprep.subr.mxu0 0.0
        %770 = vmatpush1.msra.mxu0 0.0
        %771 = vmatprep.subr.mxu0 0.0
        %772 = vmatpush1.msra.mxu0 0.0
        %773 = vmatprep.subr.mxu0 0.0
        %774 = vmatpush1.msra.mxu0 0.0
        %775 = vmatprep.subr.mxu0 0.0
        %776 = vmatpush1.msra.mxu0 0.0
        %777 = vmatprep.subr.mxu0 0.0
        %778 = vmatpush1.msra.mxu0 0.0
        %779 = vmatprep.subr.mxu0 0.0
        %780 = vmatpush1.msra.mxu0 0.0
        %781 = vmatprep.subr.mxu0 0.0
        %782 = vmatpush1.msra.mxu0 0.0
        %783 = vmatprep.subr.mxu0 0.0
        %784 = vmatpush1.msra.mxu0 0.0
        %785 = vmatprep.mubr.f32.mxu0 0.0
        %v786 = vand.u32 %v465, 4294901760
        %v787 = vsub.f32 %v465, %v786
        %v788 = vand.u32 %v787, 4294901760
        %789 = vmatmul.mubr.f32.gmra.mrb[0].mxu0 %v788
        %v790 = vpop.f32.mrb[0].mxu0
        %v791 = vadd.f32 %v714, %v790
        %v792 = vpop.f32.mrb[0].mxu0
        %793 = vdwg.mxu0
        %794 = vmatprep.subr.mxu0 0.0
        %v795 = vand.u32 %v454, 4294901760
        %v796 = vsub.f32 %v454, %v795
        %v797 = vand.u32 %v796, 4294901760
        %798 = vmatpush1.msra.mxu0 %v797
        %799 = vmatprep.subr.mxu0 0.0
        %v800 = vand.u32 %v455, 4294901760
        %v801 = vsub.f32 %v455, %v800
        %v802 = vand.u32 %v801, 4294901760
        %803 = vmatpush1.msra.mxu0 %v802
        %804 = vmatprep.subr.mxu0 0.0
        %v805 = vand.u32 %v456, 4294901760
        %v806 = vsub.f32 %v456, %v805
        %v807 = vand.u32 %v806, 4294901760
        %808 = vmatpush1.msra.mxu0 %v807
        %809 = vmatprep.subr.mxu0 0.0
        %v810 = vand.u32 %v457, 4294901760
        %v811 = vsub.f32 %v457, %v810
        %v812 = vand.u32 %v811, 4294901760
        %813 = vmatpush1.msra.mxu0 %v812
        %814 = vmatprep.subr.mxu0 0.0
        %815 = vmatpush1.msra.mxu0 0.0
        %816 = vmatprep.subr.mxu0 0.0
        %817 = vmatpush1.msra.mxu0 0.0
        %818 = vmatprep.subr.mxu0 0.0
        %819 = vmatpush1.msra.mxu0 0.0
        %820 = vmatprep.subr.mxu0 0.0
        %821 = vmatpush1.msra.mxu0 0.0
        %822 = vmatprep.subr.mxu0 0.0
        %823 = vmatpush1.msra.mxu0 0.0
        %824 = vmatprep.subr.mxu0 0.0
        %825 = vmatpush1.msra.mxu0 0.0
        %826 = vmatprep.subr.mxu0 0.0
        %827 = vmatpush1.msra.mxu0 0.0
        %828 = vmatprep.subr.mxu0 0.0
        %829 = vmatpush1.msra.mxu0 0.0
        %830 = vmatprep.subr.mxu0 0.0
        %831 = vmatpush1.msra.mxu0 0.0
        %832 = vmatprep.subr.mxu0 0.0
        %833 = vmatpush1.msra.mxu0 0.0
        %834 = vmatprep.subr.mxu0 0.0
        %835 = vmatpush1.msra.mxu0 0.0
        %836 = vmatprep.subr.mxu0 0.0
        %837 = vmatpush1.msra.mxu0 0.0
        %838 = vmatprep.subr.mxu0 0.0
        %839 = vmatpush1.msra.mxu0 0.0
        %840 = vmatprep.subr.mxu0 0.0
        %841 = vmatpush1.msra.mxu0 0.0
        %842 = vmatprep.subr.mxu0 0.0
        %843 = vmatpush1.msra.mxu0 0.0
        %844 = vmatprep.subr.mxu0 0.0
        %845 = vmatpush1.msra.mxu0 0.0
        %846 = vmatprep.subr.mxu0 0.0
        %847 = vmatpush1.msra.mxu0 0.0
        %848 = vmatprep.subr.mxu0 0.0
        %849 = vmatpush1.msra.mxu0 0.0
        %850 = vmatprep.subr.mxu0 0.0
        %851 = vmatpush1.msra.mxu0 0.0
        %852 = vmatprep.subr.mxu0 0.0
        %853 = vmatpush1.msra.mxu0 0.0
        %854 = vmatprep.subr.mxu0 0.0
        %855 = vmatpush1.msra.mxu0 0.0
        %856 = vmatprep.subr.mxu0 0.0
        %857 = vmatpush1.msra.mxu0 0.0
        %858 = vmatprep.subr.mxu0 0.0
        %859 = vmatpush1.msra.mxu0 0.0
        %860 = vmatprep.subr.mxu0 0.0
        %861 = vmatpush1.msra.mxu0 0.0
        %862 = vmatprep.subr.mxu0 0.0
        %863 = vmatpush1.msra.mxu0 0.0
        %864 = vmatprep.subr.mxu0 0.0
        %865 = vmatpush1.msra.mxu0 0.0
        %866 = vmatprep.subr.mxu0 0.0
        %867 = vmatpush1.msra.mxu0 0.0
        %868 = vmatprep.subr.mxu0 0.0
        %869 = vmatpush1.msra.mxu0 0.0
        %870 = vmatprep.mubr.f32.mxu0 0.0
        %v871 = vand.u32 %v465, 4294901760
        %872 = vmatmul.mubr.f32.gmra.mrb[0].mxu0 %v871
        %v873 = vpop.f32.mrb[0].mxu0
        %v874 = vadd.f32 %v791, %v873
        %v875 = vpop.f32.mrb[0].mxu0
        %876 = vdwg.mxu0
        %877 = vmatprep.subr.mxu0 0.0
        %v878 = vand.u32 %v454, 4294901760
        %879 = vmatpush1.msra.mxu0 %v878
        %880 = vmatprep.subr.mxu0 0.0
        %v881 = vand.u32 %v455, 4294901760
        %882 = vmatpush1.msra.mxu0 %v881
        %883 = vmatprep.subr.mxu0 0.0
        %v884 = vand.u32 %v456, 4294901760
        %885 = vmatpush1.msra.mxu0 %v884
        %886 = vmatprep.subr.mxu0 0.0
        %v887 = vand.u32 %v457, 4294901760
        %888 = vmatpush1.msra.mxu0 %v887
        %889 = vmatprep.subr.mxu0 0.0
        %890 = vmatpush1.msra.mxu0 0.0
        %891 = vmatprep.subr.mxu0 0.0
        %892 = vmatpush1.msra.mxu0 0.0
        %893 = vmatprep.subr.mxu0 0.0
        %894 = vmatpush1.msra.mxu0 0.0
        %895 = vmatprep.subr.mxu0 0.0
        %896 = vmatpush1.msra.mxu0 0.0
        %897 = vmatprep.subr.mxu0 0.0
        %898 = vmatpush1.msra.mxu0 0.0
        %899 = vmatprep.subr.mxu0 0.0
        %900 = vmatpush1.msra.mxu0 0.0
        %901 = vmatprep.subr.mxu0 0.0
        %902 = vmatpush1.msra.mxu0 0.0
        %903 = vmatprep.subr.mxu0 0.0
        %904 = vmatpush1.msra.mxu0 0.0
        %905 = vmatprep.subr.mxu0 0.0
        %906 = vmatpush1.msra.mxu0 0.0
        %907 = vmatprep.subr.mxu0 0.0
        %908 = vmatpush1.msra.mxu0 0.0
        %909 = vmatprep.subr.mxu0 0.0
        %910 = vmatpush1.msra.mxu0 0.0
        %911 = vmatprep.subr.mxu0 0.0
        %912 = vmatpush1.msra.mxu0 0.0
        %913 = vmatprep.subr.mxu0 0.0
        %914 = vmatpush1.msra.mxu0 0.0
        %915 = vmatprep.subr.mxu0 0.0
        %916 = vmatpush1.msra.mxu0 0.0
        %917 = vmatprep.subr.mxu0 0.0
        %918 = vmatpush1.msra.mxu0 0.0
        %919 = vmatprep.subr.mxu0 0.0
        %920 = vmatpush1.msra.mxu0 0.0
        %921 = vmatprep.subr.mxu0 0.0
        %922 = vmatpush1.msra.mxu0 0.0
        %923 = vmatprep.subr.mxu0 0.0
        %924 = vmatpush1.msra.mxu0 0.0
        %925 = vmatprep.subr.mxu0 0.0
        %926 = vmatpush1.msra.mxu0 0.0
        %927 = vmatprep.subr.mxu0 0.0
        %928 = vmatpush1.msra.mxu0 0.0
        %929 = vmatprep.subr.mxu0 0.0
        %930 = vmatpush1.msra.mxu0 0.0
        %931 = vmatprep.subr.mxu0 0.0
        %932 = vmatpush1.msra.mxu0 0.0
        %933 = vmatprep.subr.mxu0 0.0
        %934 = vmatpush1.msra.mxu0 0.0
        %935 = vmatprep.subr.mxu0 0.0
        %936 = vmatpush1.msra.mxu0 0.0
        %937 = vmatprep.subr.mxu0 0.0
        %938 = vmatpush1.msra.mxu0 0.0
        %939 = vmatprep.subr.mxu0 0.0
        %940 = vmatpush1.msra.mxu0 0.0
        %941 = vmatprep.subr.mxu0 0.0
        %942 = vmatpush1.msra.mxu0 0.0
        %943 = vmatprep.subr.mxu0 0.0
        %944 = vmatpush1.msra.mxu0 0.0
        %945 = vmatprep.mubr.f32.mxu0 0.0
        %v946 = vand.u32 %v465, 4294901760
        %947 = vmatmul.mubr.f32.gmra.mrb[0].mxu0 %v946
        %v948 = vpop.f32.mrb[0].mxu0
        %v949 = vadd.f32 %v874, %v948
        %v950 = vpop.f32.mrb[0].mxu0
        %951 = vdwg.mxu0
        %v952 = vmax.f32 %v949, 0.0
        %v953 = vmin.f32 %v952, 6.0
        %954 = vst [vmem:[%s291] sm:$0xff] %v953
        %s955 = sand.u32 %s152, 1
        %s956 = sand.u32 %s152, 1
        %s957 = smul.addr %s956, 32
        %s958 = scalar_lea.vmem [#allocation2], %s957
        %p959 = scmp.lt.s32.totalorder %s22, 1
        %s960 = scalar_select %p959, %s22, 1
        %p961 = scmp.lt.s32.totalorder %s23, 1
        %s962 = scalar_select %p961, %s23, 1
        %s963 = smul.addr %s960, 2
        %s964 = sadd.s32 %s962, %s963
        %s965 = smul.addr %s964, 8
        %s966 = scalar_lea.vmem %s6, %s965
        // Predicated region
        $region41: #{graph_path_forward.1} parent=39 // pred_check
          %p967 = pneg %p162
        $region42: #{graph_path_forward.1} parent=39 // pred_check_branch
          %969 = sbr.rel (%p967) target = $region44
        $region43: #{graph_path_forward.1} parent=39 // pred_region
          %s970 = smul.addr %s22, 8
          %s971 = sadd.s32 %s23, %s970
          %s972 = smul.addr %s971, 8
          %s973 = scalar_lea.vmem %s5, %s972
          // Predicated region
          $region45: #{graph_path_forward.1} parent=43 // pred_check
            _
          $region46: #{graph_path_forward.1} parent=43 // pred_check_branch
            %975 = sbr.rel (0) target = $region48
          $region47: #{graph_path_forward.1} parent=43 // pred_region
            // Predicated region
            $region49: #{graph_path_forward.1} parent=47 // pred_check
              _
            $region50: #{graph_path_forward.1} parent=47 // pred_check_branch
              %977 = sbr.rel (0) target = $region52
            $region51: #{graph_path_forward.1} parent=47 // pred_region
              // Predicated region
              $region64: #{graph_path_forward.1} parent=51 // pred_check
                _
              $region65: #{graph_path_forward.1} parent=51 // pred_check_branch
                %998 = sbr.rel (0) target = $region67
              $region66: #{graph_path_forward.1} parent=51 // pred_region
                loop: start=0, step=1, limit=1
                $region68: #{graph_path_forward.1} parent=66 // loop_pre_header
                  _
                $region69: #{graph_path_forward.1} parent=66 // loop_header
                  %s1000 = sphi 0, %s1004
                  %p1001 = scmp.ge.s32.totalorder %s1000, 1
                  %s1005 = sphi %s958, %s958
                  %s1006 = sphi %s973, %s973
                $region70: #{graph_path_forward.1} parent=66 // loop_header_branch
                  %1003 = sbr.rel (%p1001) target = $region74
                $region71: #{graph_path_forward.1} parent=66 // loop_body
                  %v1007 = vld [vmem:[%s1005] sm:$0xff]
                  %1008 = vst [vmem:[%s1006] sm:$0xff] %v1007
                  %v1009 = vld [vmem:[%s1005 + $0x8] sm:$0xff]
                  %1010 = vst [vmem:[%s1006 + $0x10] sm:$0xff] %v1009
                  %v1011 = vld [vmem:[%s1005 + $0x10] sm:$0xff]
                  %1012 = vst [vmem:[%s1006 + $0x20] sm:$0xff] %v1011
                  %v1013 = vld [vmem:[%s1005 + $0x18] sm:$0xff]
                  %1014 = vst [vmem:[%s1006 + $0x30] sm:$0xff] %v1013
                $region72: #{graph_path_forward.1} parent=66 // loop_footer
                  %s1004 = sadd.s32 1, %s1000
                $region73: #{graph_path_forward.1} parent=66 // loop_footer_branch
                  %999 = sbr.rel target = $region69
                $region74: #{graph_path_forward.1} parent=66 // loop_exit
                  _
              $region67: #{graph_path_forward.1} parent=51 // pred_fallthru
                _
              // Predicated region
              $region75: #{graph_path_forward.1} parent=51 // pred_check
                _
              $region76: #{graph_path_forward.1} parent=51 // pred_check_branch
                %1016 = sbr.rel target = $region78
              $region77: #{graph_path_forward.1} parent=51 // pred_region
                _
              $region78: #{graph_path_forward.1} parent=51 // pred_fallthru
                _
            $region52: #{graph_path_forward.1} parent=47 // pred_fallthru
              _
            // Predicated region
            $region53: #{graph_path_forward.1} parent=47 // pred_check
              _
            $region54: #{graph_path_forward.1} parent=47 // pred_check_branch
              %979 = sbr.rel target = $region56
            $region55: #{graph_path_forward.1} parent=47 // pred_region
              loop: start=0, step=1, limit=1
              $region57: #{graph_path_forward.1} parent=55 // loop_pre_header
                _
              $region58: #{graph_path_forward.1} parent=55 // loop_header
                %s982 = sphi 0, %s986
                %p983 = scmp.ge.s32.totalorder %s982, 1
                %s987 = sphi %s958, %s958
                %s988 = sphi %s973, %s973
              $region59: #{graph_path_forward.1} parent=55 // loop_header_branch
                %985 = sbr.rel (%p983) target = $region63
              $region60: #{graph_path_forward.1} parent=55 // loop_body
                %v989 = vld [vmem:[%s987] sm:$0xff]
                %990 = vst [vmem:[%s988] sm:$0xff] %v989
                %v991 = vld [vmem:[%s987 + $0x8] sm:$0xff]
                %992 = vst [vmem:[%s988 + $0x10] sm:$0xff] %v991
                %v993 = vld [vmem:[%s987 + $0x10] sm:$0xff]
                %994 = vst [vmem:[%s988 + $0x20] sm:$0xff] %v993
                %v995 = vld [vmem:[%s987 + $0x18] sm:$0xff]
                %996 = vst [vmem:[%s988 + $0x30] sm:$0xff] %v995
              $region61: #{graph_path_forward.1} parent=55 // loop_footer
                %s986 = sadd.s32 1, %s982
              $region62: #{graph_path_forward.1} parent=55 // loop_footer_branch
                %981 = sbr.rel target = $region58
              $region63: #{graph_path_forward.1} parent=55 // loop_exit
                _
            $region56: #{graph_path_forward.1} parent=47 // pred_fallthru
              _
          $region48: #{graph_path_forward.1} parent=43 // pred_fallthru
            _
          %1017 = vnop
        $region44: #{graph_path_forward.1} parent=39 // pred_fallthru
          _
        // Predicated region
        $region79: #{graph_path_forward.1} parent=39 // pred_check
          %p1018 = pneg %p190
        $region80: #{graph_path_forward.1} parent=39 // pred_check_branch
          %1020 = sbr.rel (%p1018) target = $region82
        $region81: #{graph_path_forward.1} parent=39 // pred_region
          _
        $region82: #{graph_path_forward.1} parent=39 // pred_fallthru
          _
      $region40: #{graph_path_forward.1} parent=5 // pred_fallthru
        _
      %p1021 = scmp.le.s32.totalorder 2, %s13
      // Predicated region
      $region83: #{graph_path_forward.1} parent=5 // pred_check
        %p1022 = pneg %p1021
      $region84: #{graph_path_forward.1} parent=5 // pred_check_branch
        %1024 = sbr.rel (%p1022) target = $region86
      $region85: #{graph_path_forward.1} parent=5 // pred_region
        %s1025 = ssub.s32 %s13, 2
        // Predicated region
        $region87: #{graph_path_forward.1} parent=85 // pred_check
          %p1026 = pneg %p168
        $region88: #{graph_path_forward.1} parent=85 // pred_check_branch
          %1028 = sbr.rel (%p1026) target = $region90
        $region89: #{graph_path_forward.1} parent=85 // pred_region
          %s1029 = sand.u32 %s153, 1
          %s1030 = sand.u32 %s153, 1
          %s1031 = smul.addr %s1030, 32
          %s1032 = scalar_lea.vmem [#allocation2], %s1031
        $region90: #{graph_path_forward.1} parent=85 // pred_fallthru
          _
        // Predicated region
        $region91: #{graph_path_forward.1} parent=85 // pred_check
          %p1033 = pneg %p196
        $region92: #{graph_path_forward.1} parent=85 // pred_check_branch
          %1035 = sbr.rel (%p1033) target = $region94
        $region93: #{graph_path_forward.1} parent=85 // pred_region
          %p1036 = scmp.lt.s32.totalorder %s24, 1
          %s1037 = scalar_select %p1036, %s24, 1
          %p1038 = scmp.lt.s32.totalorder %s25, 1
          %s1039 = scalar_select %p1038, %s25, 1
          %s1040 = smul.addr %s1037, 2
          %s1041 = sadd.s32 %s1039, %s1040
          %s1042 = smul.addr %s1041, 8
          %s1043 = scalar_lea.vmem %s6, %s1042
        $region94: #{graph_path_forward.1} parent=85 // pred_fallthru
          _
      $region86: #{graph_path_forward.1} parent=5 // pred_fallthru
        _
    $region6: #{graph_path_forward.1} parent=1 // loop_footer
      %s17 = sadd.s32 1, %s13
    $region7: #{graph_path_forward.1} parent=1 // loop_footer_branch
      %12 = sbr.rel target = $region3
    $region8: #{graph_path_forward.1} parent=1 // loop_exit
      _

</llo_original>
